<compile_context>
chip_gen: v7x
topology: tpu7x:2x2x1
jax: 0.10.0
libtpu: 0.0.40
codegen_flags: <defaults>
</compile_context>

<pallas_src>
import functools

import jax
import jax.numpy as jnp
from jax.experimental import pallas as pl
from jax.experimental.pallas import tpu as pltpu

# ----------------------------------------------------------------------------
# Synthetic, deterministic "config" (mirrors the fields used in forward()).
# ----------------------------------------------------------------------------
KEYPOINTS = 4            # config.keypoints
DIM = 2                  # (x, y) per keypoint
VELOCITY_MA_RANGE = 2    # config.velocity_ma_range  (must be >= 1)
OBS_LEN = 8              # config.obs_len            (config.tforcing == 0)
SEQ_LEN = 8              # config.seq_len
BATCH = 2
T_RAW = 24               # raw number of frames per sequence


# ----------------------------------------------------------------------------
# Pallas kernel: velocity / moving-average / acceleration feature pipeline.
# ----------------------------------------------------------------------------
def _feature_kernel(x_ref, out_ref, *, n):
    """Per-batch-element feature pipeline.

    x_ref   : (T, F)       positions; time on sublanes, keypoint*dim on lanes.
    out_ref : (T_out, 3F)  lane-packed [pos | smoothed vel | acc] frames,
                           T_out = T - n - 1.
    Time shifts use pltpu.roll (XLU slot, free w.r.t. the VPU); the rolled
    wrap-around tail rows are sliced off before the single store, so no
    invalid data ever leaves the kernel.
    """
    x = x_ref[...]                                        # (T, F)
    T = x.shape[0]
    T_out = out_ref.shape[0]                              # T - n - 1

    # velocities[t] = x[t+1] - x[t]                       (valid t <= T-2)
    x_next = pltpu.roll(x, shift=T - 1, axis=0)           # x[(t+1) % T]
    vel = x_next - x

    # moving average over window n:  lpv[t] = mean(vel[t .. t+n-1])
    # TODO(synk): for large velocity_ma_range (n > ~4) switch to a running-sum
    # / cumsum-difference form (O(1) rolls per output); at n=2 the unrolled
    # roll+add chain is already minimal.
    lpv = vel
    for s in range(1, n):
        lpv = lpv + pltpu.roll(vel, shift=(T - s) % T, axis=0)   # vel[t+s]
    lpv = lpv / jnp.float32(n)                            # (valid t <= T-1-n)

    vel_out = pltpu.roll(lpv, shift=T - 1, axis=0)        # lpv[t+1]
    acc = vel_out - lpv                                   # lpv[t+1] - lpv[t]
    pos = pltpu.roll(x, shift=(T - (n + 1)) % T, axis=0)  # x[t+n+1]

    # One lane-packed value, one store, only the valid rows.
    packed = jnp.concatenate([pos, vel_out, acc], axis=-1)  # (T, 3F)
    out_ref[...] = packed[:T_out, :]


def build_features(sequence, n=VELOCITY_MA_RANGE):
    """sequence: (B, T, K, D) float32 -> features (B, T-n-1, 3*K*D) float32."""
    if n < 1:
        raise ValueError("velocity_ma_range must be >= 1")
    B, T, K, D = sequence.shape
    if T <= n + 1:
        raise ValueError("sequence too short for the requested ma range")
    F = K * D
    T_out = T - n - 1

    # (B, T, K, D) -> (B, T, F): contiguous trailing-dim merge, no data motion.
    x = sequence.astype(jnp.float32).reshape(B, T, F)

    cost = pl.CostEstimate(
        flops=B * (n + 3) * T * F,
        transcendentals=0,
        bytes_accessed=B * T * F * 4 + B * T_out * 3 * F * 4,
    )

    # Grid over the batch axis; each grid step consumes one (T, F) slab and
    # emits its (T_out, 3F) feature slab directly in the torch layout, so the
    # wrapper needs no transpose/reshape/slice at all.  "parallel" lets v7x's
    # two TensorCores split the batch once it scales (no effect at B=2).
    # TODO(synk): at this toy F=8 the lane density is 8/128; for production
    # shapes fuse this into the generator's first Pallas kernel (or fold more
    # feature/time onto lanes) rather than micro-tuning this standalone call.
    return pl.pallas_call(
        functools.partial(_feature_kernel, n=n),
        out_shape=jax.ShapeDtypeStruct((B, T_out, 3 * F), jnp.float32),
        grid=(B,),
        in_specs=[pl.BlockSpec((None, T, F), lambda b: (b, 0, 0))],
        out_specs=pl.BlockSpec((None, T_out, 3 * F), lambda b: (b, 0, 0)),
        compiler_params=pltpu.CompilerParams(
            dimension_semantics=("parallel",)),
        cost_estimate=cost,
    )(x)


# ----------------------------------------------------------------------------
# InteractionSolver.forward equivalent (shuffle=False, random_start_idx=False,
# 5-tuple batch path, net_type='rnn'/'transformer' slicing semantics).
# ----------------------------------------------------------------------------
@functools.partial(jax.jit, static_argnums=(1, 2))
def _forward_arrays(sequence, seq_len, obs_len):
    feat = build_features(sequence)                        # (B, T', 3F)

    start_idx = 0                                          # random_start_idx=False
    obs_seq = feat[:, start_idx:start_idx + obs_len]       # (B, obs_len, 3F)
    gt_seq = feat[:, start_idx + obs_len:]                 # (B, T'-obs_len, 3F)

    ground_truth = gt_seq[:, :seq_len, :]                  # (B, seq_len, 3F)
    conditioning = obs_seq[:, 1:, :]                       # (B, obs_len-1, 3F)

    # TODO(synk): DynamicalModel / TransformerGenerator / SRNNGenerator /
    # Discriminator are external modules whose definitions are not in
    # nets/solver.py; the (reconstruction, generation) pair is returned as
    # zero placeholders with the shapes the rnn/transformer branches produce.
    reconstruction = jnp.zeros_like(conditioning)
    generation = jnp.zeros_like(ground_truth)
    return reconstruction, generation, ground_truth, conditioning


def interaction_solver_forward(sequence, lengths, seq_len=SEQ_LEN, obs_len=OBS_LEN):
    reco, gen, gt, cond = _forward_arrays(sequence, seq_len, obs_len)
    return reco, gen, gt, cond, lengths


# ----------------------------------------------------------------------------
# Pure-JAX reference (mirrors the cumsum-based torch `ma`) for validation.
# ----------------------------------------------------------------------------
def _ref_features(sequence, n=VELOCITY_MA_RANGE):
    B, T, K, D = sequence.shape
    vel = sequence[:, 1:] - sequence[:, :-1]                       # (B,T-1,K,D)
    c = jnp.cumsum(vel, axis=1)
    lpv = jnp.concatenate([c[:, n - 1:n], c[:, n:] - c[:, :-n]], axis=1) / n
    x1 = jnp.concatenate([sequence[:, max(1, n):], lpv], axis=2)
    acc = lpv[:, 1:] - lpv[:, :-1]
    x2 = jnp.concatenate([x1[:, 1:], acc], axis=2)                 # (B,T-n-1,3K,D)
    return x2.reshape(B, T - n - 1, 3 * K * D)


# ----------------------------------------------------------------------------
if __name__ == "__main__":
    key = jax.random.PRNGKey(0)
    sequence = jax.random.normal(
        key, (BATCH, T_RAW, KEYPOINTS, DIM), dtype=jnp.float32
    )
    lengths = [BATCH]  # as in the 5-tuple batch path

    reco, gen, gt, cond, lens = interaction_solver_forward(sequence, lengths)
    jax.block_until_ready((reco, gen, gt, cond))

    # Validate the Pallas feature pipeline against the pure-JAX reference.
    feat_kernel = build_features(sequence)
    feat_ref = _ref_features(sequence)
    jax.block_until_ready(feat_kernel)
    assert feat_kernel.shape == feat_ref.shape
    assert jnp.allclose(feat_kernel, feat_ref, atol=1e-5, rtol=1e-5)

    # Shape sanity checks (semantics of the torch slicing).
    assert gt.shape == (BATCH, SEQ_LEN, 3 * KEYPOINTS * DIM)
    assert cond.shape == (BATCH, OBS_LEN - 1, 3 * KEYPOINTS * DIM)

    print("KERNEL_OK")
</pallas_src>

<mosaic_0001>
module attributes {stable_mosaic.version = 11 : i64} {
  func.func @_feature_kernel(%arg0: i32, %arg1: memref<1x24x8xf32, #tpu.memory_space<vmem>>, %arg2: memref<1x21x24xf32, #tpu.memory_space<vmem>>) attributes {dimension_semantics = [#tpu.dimension_semantics<parallel>], iteration_bounds = array<i64: 2>, scalar_prefetch = 0 : i64, scratch_operands = 0 : i64, tpu.core_type = #tpu.core_type<tc>, window_params = [{transform_indices = @transform_0, window_bounds = array<i64: 1, 24, 8>}, {transform_indices = @transform_1, window_bounds = array<i64: 1, 21, 24>}]} {
    %c0 = arith.constant 0 : index
    %c0_0 = arith.constant 0 : index
    %c0_1 = arith.constant 0 : index
    %0 = vector.load %arg1[%c0, %c0_0, %c0_1] : memref<1x24x8xf32, #tpu.memory_space<vmem>>, vector<1x24x8xf32>
    %1 = vector.shape_cast %0 : vector<1x24x8xf32> to vector<24x8xf32>
    %c23_i32 = arith.constant 23 : i32
    %2 = tpu.dynamic_rotate %1 by %c23_i32 dim 0 : vector<24x8xf32>, i32 -> vector<24x8xf32>
    %3 = arith.subf %2, %1 : vector<24x8xf32>
    %c23_i32_2 = arith.constant 23 : i32
    %4 = tpu.dynamic_rotate %3 by %c23_i32_2 dim 0 : vector<24x8xf32>, i32 -> vector<24x8xf32>
    %5 = arith.addf %3, %4 : vector<24x8xf32>
    %cst = arith.constant 2.000000e+00 : f32
    %6 = vector.broadcast %cst : f32 to vector<24x8xf32>
    %7 = arith.divf %5, %6 : vector<24x8xf32>
    %c23_i32_3 = arith.constant 23 : i32
    %8 = tpu.dynamic_rotate %7 by %c23_i32_3 dim 0 : vector<24x8xf32>, i32 -> vector<24x8xf32>
    %9 = arith.subf %8, %7 : vector<24x8xf32>
    %c21_i32 = arith.constant 21 : i32
    %10 = tpu.dynamic_rotate %1 by %c21_i32 dim 0 : vector<24x8xf32>, i32 -> vector<24x8xf32>
    %11 = tpu.concatenate %10, %8, %9 in 1 : vector<24x8xf32>, vector<24x8xf32>, vector<24x8xf32> -> vector<24x24xf32>
    %12 = vector.extract_strided_slice %11 {offsets = [0, 0], sizes = [21, 24], strides = [1, 1]} : vector<24x24xf32> to vector<21x24xf32>
    %c0_4 = arith.constant 0 : index
    %c0_5 = arith.constant 0 : index
    %c0_6 = arith.constant 0 : index
    %13 = vector.load %arg2[%c0_4, %c0_5, %c0_6] : memref<1x21x24xf32, #tpu.memory_space<vmem>>, vector<1x21x24xf32>
    %14 = vector.shape_cast %13 : vector<1x21x24xf32> to vector<21x24xf32>
    %15 = vector.shape_cast %12 : vector<21x24xf32> to vector<1x21x24xf32>
    tpu.vector_store %arg2[%c0_4, %c0_5, %c0_6], %15 {strides = array<i32>} : memref<1x21x24xf32, #tpu.memory_space<vmem>>, vector<1x21x24xf32>,
    return
  }
  func.func @transform_0(%arg0: i32) -> (i32, i32, i32) {
    %c0_i32 = arith.constant 0 : i32
    %c0_i32_0 = arith.constant 0 : i32
    %c0_i32_1 = arith.constant 0 : i32
    return %arg0, %c0_i32, %c0_i32_0 : i32, i32, i32
  }
  func.func @transform_1(%arg0: i32) -> (i32, i32, i32) {
    %c0_i32 = arith.constant 0 : i32
    %c0_i32_0 = arith.constant 0 : i32
    %c0_i32_1 = arith.constant 0 : i32
    return %arg0, %c0_i32, %c0_i32_0 : i32, i32, i32
  }
}

</mosaic_0001>

<llo_original>
// kernel: _forward_arrays.1
$region0: #{_forward_arrays.1}
  #allocation0 [shape = 'u32[]', space=smem, size = 0x4, offset = 0x4, fixed_abs, tag = 'smem constant byte address 0x4 - core index']
  #allocation1 [shape = 'u32[144,128]{1,0:T(1,128)}', space=vmem, size = 0x12000, scoped, tag = 'internal scratch']
  %s0 = inlined_call_operand.vmem [shape: f32[2,24,8], index: 0, kind: input, shape index: {}]
  %s1 = inlined_call_operand.vmem [shape: f32[2,21,24], index: 1, kind: output, shape index: {}]
  %s2 = sld [smem:[#allocation0]]
  $region37: #{_forward_arrays.1} parent=0
    _
  %s4 = ssub.s32 1, %s2
  %s5 = scalar_select 0, %s4, %s2
  loop: start=0, step=1, limit=4
  $region2: #{_forward_arrays.1} parent=0 // loop_pre_header
    _
  $region3: #{_forward_arrays.1} parent=0 // loop_header
    %s7 = sphi 0, %s11
    %p8 = scmp.ge.s32.totalorder %s7, 4
    %s17 = sphi 0, %s19
    %s20 = sphi 0, %s17
    %s21 = sphi 0, %s20
    %s37 = sphi 0, %s21
    %s43 = sphi 0, %s45
    %s46 = sphi 0, %s43
    %s47 = sphi 0, %s46
    %s63 = sphi 0, %s47
  $region4: #{_forward_arrays.1} parent=0 // loop_header_branch
    %10 = sbr.rel (%p8) target = $region8
  $region5: #{_forward_arrays.1} parent=0 // loop_body
    %s12 = ssub.s32 %s7, 1
    %s13 = ssub.s32 %s7, 2
    %s14 = sadd.s32 %s7, 1
    %s15 = ssub.s32 %s7, %s14
    %p16 = scmp.eq.s32.totalorder %s15, 0
    %s18 = sadd.s32 %s17, 1
    %s19 = scalar_select %p16, %s17, %s18
    %p22 = pneg %p16
    %p23 = scmp.eq.s32.totalorder %s7, 1
    %p24 = por %p22, %p23
    %p25 = scmp.ne.s32.totalorder %s17, %s20
    %p26 = scmp.eq.s32.totalorder %s7, 0
    %p27 = por %p25, %p26
    %p28 = scmp.ne.s32.totalorder %s17, %s20
    %p29 = scmp.eq.s32.totalorder %s12, 1
    %p30 = por %p28, %p29
    %p31 = scmp.ne.s32.totalorder %s20, %s21
    %p32 = scmp.eq.s32.totalorder %s12, 0
    %p33 = por %p31, %p32
    %p34 = scmp.ne.s32.totalorder %s20, %s21
    %p35 = scmp.eq.s32.totalorder %s13, 1
    %p36 = por %p34, %p35
    %p38 = scmp.ne.s32.totalorder %s21, %s37
    %p39 = scmp.eq.s32.totalorder %s13, 0
    %p40 = por %p38, %p39
    %s41 = ssub.s32 %s7, %s14
    %p42 = scmp.eq.s32.totalorder %s41, 0
    %s44 = sadd.s32 %s43, 1
    %s45 = scalar_select %p42, %s43, %s44
    %p48 = pneg %p42
    %p49 = scmp.eq.s32.totalorder %s7, 1
    %p50 = por %p48, %p49
    %p51 = scmp.ne.s32.totalorder %s43, %s46
    %p52 = scmp.eq.s32.totalorder %s7, 0
    %p53 = por %p51, %p52
    %p54 = scmp.ne.s32.totalorder %s43, %s46
    %p55 = scmp.eq.s32.totalorder %s12, 1
    %p56 = por %p54, %p55
    %p57 = scmp.ne.s32.totalorder %s46, %s47
    %p58 = scmp.eq.s32.totalorder %s12, 0
    %p59 = por %p57, %p58
    %p60 = scmp.ne.s32.totalorder %s46, %s47
    %p61 = scmp.eq.s32.totalorder %s13, 1
    %p62 = por %p60, %p61
    %p64 = scmp.ne.s32.totalorder %s47, %s63
    %p65 = scmp.eq.s32.totalorder %s13, 0
    %p66 = por %p64, %p65
    %p67 = scmp.le.s32.totalorder 1, %s7
    %p68 = scmp.lt.s32.totalorder %s7, 3
    %p69 = pnand %p67, %p68
    %p70 = pneg %p69
    // Predicated region
    $region9: #{_forward_arrays.1} parent=5 // pred_check
      _
    $region10: #{_forward_arrays.1} parent=5 // pred_check_branch
      %72 = sbr.rel (%p69) target = $region12
    $region11: #{_forward_arrays.1} parent=5 // pred_region
      %s73 = ssub.s32 %s7, 1
    $region12: #{_forward_arrays.1} parent=5 // pred_fallthru
      _
    %p74 = scmp.lt.s32.totalorder %s7, 2
    // Predicated region
    $region13: #{_forward_arrays.1} parent=5 // pred_check
      %p75 = pneg %p74
    $region14: #{_forward_arrays.1} parent=5 // pred_check_branch
      %77 = sbr.rel (%p75) target = $region16
    $region15: #{_forward_arrays.1} parent=5 // pred_region
      // Predicated region
      $region17: #{_forward_arrays.1} parent=15 // pred_check
        %p78 = pneg %p27
      $region18: #{_forward_arrays.1} parent=15 // pred_check_branch
        %80 = sbr.rel (%p78) target = $region20
      $region19: #{_forward_arrays.1} parent=15 // pred_region
        %p81 = scmp.lt.s32.totalorder %s7, 1
        %s82 = scalar_select %p81, %s7, 1
        %s83 = smul.addr %s82, 3
        %s84 = smul.addr %s83, 8
        %s85 = scalar_lea.vmem %s0, %s84
      $region20: #{_forward_arrays.1} parent=15 // pred_fallthru
        _
    $region16: #{_forward_arrays.1} parent=5 // pred_fallthru
      _
    %p86 = scmp.le.s32.totalorder 1, %s7
    %p87 = scmp.lt.s32.totalorder %s7, 3
    %p88 = pnand %p86, %p87
    %p89 = pneg %p88
    // Predicated region
    $region21: #{_forward_arrays.1} parent=5 // pred_check
      _
    $region22: #{_forward_arrays.1} parent=5 // pred_check_branch
      %91 = sbr.rel (%p88) target = $region24
    $region23: #{_forward_arrays.1} parent=5 // pred_region
      %s92 = ssub.s32 %s7, 1
      %p93 = scmp.lt.s32.totalorder %s12, 1
      %s94 = scalar_select %p93, %s12, 1
      %s95 = smul.addr %s94, 3
      %s96 = smul.addr %s95, 8
      %s97 = scalar_lea.vmem %s0, %s96
      %p98 = pneg %p33
      %p99 = pneg %p30
      %p100 = pneg %p59
      %p101 = pneg %p56
      %p102 = scmp.lt.s32.totalorder %s12, 1
      %s103 = scalar_select %p102, %s12, 1
      %s104 = smul.addr %s103, 3
      %s105 = smul.addr %s104, 8
      %s106 = scalar_lea.vmem %s1, %s105
      %p107 = scmp.lt.s32.totalorder %s12, 1
      %s108 = scalar_select %p107, %s12, 1
      %s109 = smul.addr %s108, 3
      %s110 = smul.addr %s109, 8
      %s111 = scalar_lea.vmem %s0, %s110
      %p112 = scmp.lt.s32.totalorder %s12, 1
      %s113 = scalar_select %p112, %s12, 1
      %s114 = smul.addr %s113, 3
      %s115 = smul.addr %s114, 8
      %s116 = scalar_lea.vmem %s1, %s115
      %v117 = vld [vmem:[%s111] sm:$0xff]
      %v118 = vld [vmem:[%s111 + $0x8] sm:$0xff]
      %v119 = vld [vmem:[%s111 + $0x10] sm:$0xff]
      %v120 = vrot.slane %v117, 1
      %v121 = vrot.slane %v118, 1
      %v122 = vrot.slane %v119, 1
      %v123 = vlaneseq
      %v124 = vshrl.u32 %v123, 7
      %vm125 = vcmp.lt.s32.totalorder %v124, 7
      %v126 = vsel %vm125, %v121, %v122
      %v127 = vsel %vm125, %v120, %v121
      %v128 = vsel %vm125, %v122, %v120
      %v129 = vsub.f32 %v127, %v117
      %v130 = vsub.f32 %v126, %v118
      %v131 = vsub.f32 %v128, %v119
      %v132 = vrot.slane %v129, 1
      %v133 = vrot.slane %v130, 1
      %v134 = vrot.slane %v131, 1
      %v135 = vsel %vm125, %v133, %v134
      %v136 = vsel %vm125, %v132, %v133
      %v137 = vsel %vm125, %v134, %v132
      %v138 = vadd.f32 %v129, %v136
      %v139 = vadd.f32 %v130, %v135
      %v140 = vadd.f32 %v131, %v137
      %v141 = vrcp.pop 2.0
      %v142 = vmul.f32 %v138, %v141
      %v143 = vmul.f32 %v139, %v141
      %v144 = vmul.f32 %v140, %v141
      %v145 = vrot.slane %v142, 1
      %v146 = vrot.slane %v143, 1
      %v147 = vrot.slane %v144, 1
      %v148 = vsel %vm125, %v146, %v147
      %v149 = vsel %vm125, %v145, %v146
      %v150 = vsel %vm125, %v147, %v145
      %v151 = vsub.f32 %v149, %v142
      %v152 = vsub.f32 %v148, %v143
      %v153 = vsub.f32 %v150, %v144
      %v154 = vrot.slane %v117, 3
      %v155 = vrot.slane %v118, 3
      %v156 = vrot.slane %v119, 3
      %vm157 = vcmp.lt.s32.totalorder %v124, 5
      %v158 = vsel %vm157, %v155, %v156
      %v159 = vsel %vm157, %v154, %v155
      %v160 = vsel %vm157, %v156, %v154
      %164 = vrot.lane.b32.xlu0 %v149, 8
      %v165 = vpop.permute.xlu0 %164
      %166 = vrot.lane.b32.xlu0 %v148, 8
      %v167 = vpop.permute.xlu0 %166
      %168 = vrot.lane.b32.xlu0 %v150, 8
      %v169 = vpop.permute.xlu0 %168
      %176 = vrot.lane.b32.xlu0 %v151, 16
      %v177 = vpop.permute.xlu0 %176
      %178 = vrot.lane.b32.xlu0 %v152, 16
      %v179 = vpop.permute.xlu0 %178
      %180 = vrot.lane.b32.xlu0 %v153, 16
      %v181 = vpop.permute.xlu0 %180
      %vm185 = vcmask 64512
      %v186 = vsel %vm185, %v159, %v165
      %v187 = vsel %vm185, %v158, %v167
      %v188 = vsel %vm185, %v160, %v169
      %vm189 = vcmask 130048
      %v190 = vsel %vm189, %v186, %v177
      %v191 = vsel %vm189, %v187, %v179
      %v192 = vsel %vm189, %v188, %v181
      %vm193 = vcmask 195584
      %194 = vst.msk [vmem:[%s116] sm:$0xff] %vm193, %v190
      %195 = vst.msk [vmem:[%s116 + $0x8] sm:$0xff] %vm193, %v191
      %vm196 = vcmask 192512
      %197 = vst.msk [vmem:[%s116 + $0x10] sm:$0x1f] %vm196, %v192
      %p198 = scmp.lt.s32.totalorder %s12, 1
      %s199 = scalar_select %p198, %s12, 1
      %s200 = smul.addr %s199, 3
      %s201 = smul.addr %s200, 8
      %s202 = scalar_lea.vmem %s1, %s201
      // Predicated region
      $region25: #{_forward_arrays.1} parent=23 // pred_check
        %p203 = pneg %p56
      $region26: #{_forward_arrays.1} parent=23 // pred_check_branch
        %205 = sbr.rel (%p203) target = $region28
      $region27: #{_forward_arrays.1} parent=23 // pred_region
        _
      $region28: #{_forward_arrays.1} parent=23 // pred_fallthru
        _
    $region24: #{_forward_arrays.1} parent=5 // pred_fallthru
      _
    %p206 = scmp.le.s32.totalorder 2, %s7
    // Predicated region
    $region29: #{_forward_arrays.1} parent=5 // pred_check
      %p207 = pneg %p206
    $region30: #{_forward_arrays.1} parent=5 // pred_check_branch
      %209 = sbr.rel (%p207) target = $region32
    $region31: #{_forward_arrays.1} parent=5 // pred_region
      %s210 = ssub.s32 %s7, 2
      // Predicated region
      $region33: #{_forward_arrays.1} parent=31 // pred_check
        %p211 = pneg %p62
      $region34: #{_forward_arrays.1} parent=31 // pred_check_branch
        %213 = sbr.rel (%p211) target = $region36
      $region35: #{_forward_arrays.1} parent=31 // pred_region
        %p214 = scmp.lt.s32.totalorder %s13, 1
        %s215 = scalar_select %p214, %s13, 1
        %s216 = smul.addr %s215, 3
        %s217 = smul.addr %s216, 8
        %s218 = scalar_lea.vmem %s1, %s217
      $region36: #{_forward_arrays.1} parent=31 // pred_fallthru
        _
    $region32: #{_forward_arrays.1} parent=5 // pred_fallthru
      _
  $region6: #{_forward_arrays.1} parent=0 // loop_footer
    %s11 = sadd.s32 1, %s7
  $region7: #{_forward_arrays.1} parent=0 // loop_footer_branch
    %6 = sbr.rel target = $region3
  $region8: #{_forward_arrays.1} parent=0 // loop_exit
    _

</llo_original>
